<compile_context>
chip_gen: v7x
topology: tpu7x:2x2x1
jax: 0.10.0
libtpu: 0.0.40
codegen_flags: <defaults>
</compile_context>

<pallas_src>
import functools

import jax
import jax.numpy as jnp
from jax.experimental import pallas as pl
from jax.experimental.pallas import tpu as pltpu


_LANE = 128            # output last dim is padded to a multiple of this
_SUBLANE = 8           # batch tiles are rounded to a multiple of this
_NEG_BIG = -1e30       # bias for padded action columns -> exp() underflows to 0
_MIN_SPLIT_ROWS = 256  # only split a single tile in two when each half >= this


def _cdiv(a, b):
    return -(-a // b)


def _round_up(x, m):
    return _cdiv(x, m) * m


# --------------------------------------------------------------------------- #
# Kernel
# --------------------------------------------------------------------------- #
def _actor_kernel(x_ref, w1_ref, b1_ref, w2_ref, b2_ref, w3_ref, b3_ref, o_ref):
    # Weights arrive in bf16 (MXU-native); x is cast here.  All elementwise
    # math (bias add, ReLU, exp, softmax) stays f32 — important on v5e where
    # the VPU/EUP have no bf16 path.
    x = x_ref[...].astype(jnp.bfloat16)                       # (TB, state_dim)

    # fc1 + ReLU  (MXU matmul, f32 accumulate)
    h1 = jnp.dot(x, w1_ref[...], preferred_element_type=jnp.float32)
    h1 = jnp.maximum(h1 + b1_ref[...], 0.0)

    # fc2 + ReLU
    h2 = jnp.dot(h1.astype(jnp.bfloat16), w2_ref[...],
                 preferred_element_type=jnp.float32)
    h2 = jnp.maximum(h2 + b2_ref[...], 0.0)

    # out + numerically-stable softmax over the last axis.  Padded action
    # columns carry a -1e30 bias, so exp() underflows to exactly 0 and the
    # real-action probabilities still sum to 1.
    logits = jnp.dot(h2.astype(jnp.bfloat16), w3_ref[...],
                     preferred_element_type=jnp.float32) + b3_ref[...]
    m = jnp.max(logits, axis=-1, keepdims=True)
    e = jnp.exp(logits - m)
    s = jnp.sum(e, axis=-1, keepdims=True)
    # Exact divide: rows sum to 1 to f32 precision (safe for Categorical
    # sampling); the divide is a handful of EUP/VPU ops per tile -> negligible.
    o_ref[...] = (e / s).astype(o_ref.dtype)


# --------------------------------------------------------------------------- #
# One-time parameter preparation (do NOT call per forward step)
# --------------------------------------------------------------------------- #
def prepare_actor_params(params):
    """Pad the output layer to a lane-dense width and cast weights to bf16.

    Call once after init / parameter update; reuse the returned tuple for
    every forward call.  Returns (device_params, action_dim).
    """
    w1, b1, w2, b2, w3, b3 = params
    action_dim = int(w3.shape[1])
    adim_p = _round_up(action_dim, _LANE)
    if adim_p != action_dim:
        w3 = jnp.pad(w3, ((0, 0), (0, adim_p - action_dim)))
        b3 = jnp.pad(b3, ((0, 0), (0, adim_p - action_dim)),
                     constant_values=_NEG_BIG)
    dparams = (w1.astype(jnp.bfloat16), b1.astype(jnp.float32),
               w2.astype(jnp.bfloat16), b2.astype(jnp.float32),
               w3.astype(jnp.bfloat16), b3.astype(jnp.float32))
    return dparams, action_dim


# --------------------------------------------------------------------------- #
# Forward
# --------------------------------------------------------------------------- #
@functools.partial(jax.jit, static_argnames=("block_batch", "out_dtype"))
def actor_forward_padded(x, dparams, *, block_batch=1024, out_dtype=jnp.float32):
    """x: (B, state_dim) f32 -> (B, adim_p) softmax probs (lane-dense padded).

    The padded action columns hold exactly 0 probability; slice
    `[:, :action_dim]` lazily in the consumer if the exact width is needed.
    """
    w1, b1, w2, b2, w3, b3 = dparams
    B, state_dim = x.shape
    hidden = w1.shape[1]
    adim_p = w3.shape[1]

    # ---- balanced batch tiling, no host-side padding of x ------------------
    n_tiles = _cdiv(B, block_batch) if B > block_batch else 1
    if n_tiles == 1 and B >= 2 * _MIN_SPLIT_ROWS:
        # Big single-tile batch: split in two so multi-TC chips (v7x) can shard
        # the "parallel" batch axis; gated so small batches on single-TC
        # v5e/v6e don't pay the per-step overhead twice.
        n_tiles = 2
    tb = _round_up(max(1, _cdiv(B, n_tiles)), _SUBLANE)
    grid = (_cdiv(B, tb),)
    # Ragged last tile: Pallas masks the out-of-bounds rows of the input block
    # and only stores the in-bounds rows of the output block; softmax is
    # row-local so the undefined padded rows are harmless.

    def const(i):
        # weights/biases: the same (only) block every grid step -> the
        # pipeline keeps them resident in VMEM (no re-copy across steps).
        return (0, 0)

    return pl.pallas_call(
        _actor_kernel,
        out_shape=jax.ShapeDtypeStruct((B, adim_p), out_dtype),
        grid_spec=pltpu.PrefetchScalarGridSpec(
            num_scalar_prefetch=0,
            grid=grid,
            in_specs=[
                pl.BlockSpec((tb, state_dim), lambda i: (i, 0)),   # x tile
                pl.BlockSpec((state_dim, hidden), const),          # w1 (bf16)
                pl.BlockSpec((1, hidden), const),                  # b1 (f32)
                pl.BlockSpec((hidden, hidden), const),             # w2 (bf16)
                pl.BlockSpec((1, hidden), const),                  # b2 (f32)
                pl.BlockSpec((hidden, adim_p), const),             # w3 (bf16)
                pl.BlockSpec((1, adim_p), const),                  # b3 (f32)
            ],
            out_specs=pl.BlockSpec((tb, adim_p), lambda i: (i, 0)),
        ),
        compiler_params=pltpu.CompilerParams(
            dimension_semantics=("parallel",),
        ),
    )(x, w1, b1, w2, b2, w3, b3)


def actor_forward(x, params, *, block_batch=1024):
    """Convenience wrapper matching the PyTorch module signature exactly.

    For performance-critical loops, call `prepare_actor_params` once and use
    `actor_forward_padded` directly (avoids per-call weight prep and the
    output-column slice).
    """
    dparams, action_dim = prepare_actor_params(params)
    out = actor_forward_padded(x, dparams, block_batch=block_batch)
    return out[:, :action_dim]


# --------------------------------------------------------------------------- #
# Init & reference
# --------------------------------------------------------------------------- #
def init_actor_params(key, state_dim, hidden, action_dim):
    """Deterministic init mimicking PyTorch's default Linear init (uniform +/- 1/sqrt(fan_in))."""
    ks = jax.random.split(key, 6)

    def lin(kw, kb, fan_in, fan_out):
        bound = 1.0 / jnp.sqrt(jnp.float32(fan_in))
        w = jax.random.uniform(kw, (fan_in, fan_out), jnp.float32, -bound, bound)
        b = jax.random.uniform(kb, (1, fan_out), jnp.float32, -bound, bound)
        return w, b

    w1, b1 = lin(ks[0], ks[1], state_dim, hidden)
    w2, b2 = lin(ks[2], ks[3], hidden, hidden)
    w3, b3 = lin(ks[4], ks[5], hidden, action_dim)
    return (w1, b1, w2, b2, w3, b3)


def actor_forward_ref(x, params):
    """Pure-JAX f32 reference for correctness checking."""
    w1, b1, w2, b2, w3, b3 = params
    h = jax.nn.relu(x @ w1 + b1)
    h = jax.nn.relu(h @ w2 + b2)
    return jax.nn.softmax(h @ w3 + b3, axis=-1)


# --------------------------------------------------------------------------- #
# Self-test
# --------------------------------------------------------------------------- #
if __name__ == "__main__":
    # Small synthetic shapes consistent with the module: state_dim=5 (fixed by
    # the source), hidden=64, action_dim stands in for len(all_track_ids).
    # action_dim=120 (non-multiple of 128) and batch=20 (non-multiple of the
    # tile / sublane) exercise both padding paths.
    STATE_DIM = 5
    HIDDEN = 64
    ACTION_DIM = 120
    BATCH = 20

    key = jax.random.PRNGKey(0)
    k_params, k_x = jax.random.split(key)

    params = init_actor_params(k_params, STATE_DIM, HIDDEN, ACTION_DIM)
    x = jax.random.normal(k_x, (BATCH, STATE_DIM), jnp.float32)

    # One-time prep (pad out-layer to 128 lanes, cast weights to bf16).
    dparams, action_dim = prepare_actor_params(params)

    # Single-tile path.
    probs_padded = jax.block_until_ready(actor_forward_padded(x, dparams))
    probs = probs_padded[:, :action_dim]        # consumer-side (lazy) slice
    ref = actor_forward_ref(x, params)

    assert probs_padded.shape == (BATCH, 128)
    assert probs.shape == (BATCH, ACTION_DIM)
    assert bool(jnp.all(jnp.isfinite(probs_padded)))
    # Padded columns carry exactly 0 probability.
    assert bool(jnp.all(probs_padded[:, ACTION_DIM:] == 0.0))
    # Exact softmax divide -> rows sum to 1 to f32 precision.
    assert jnp.allclose(jnp.sum(probs, axis=-1), 1.0, atol=1e-3)
    # bf16 MXU operands vs full-f32 reference.
    assert jnp.allclose(probs, ref, atol=3e-3, rtol=5e-2)

    # Multi-tile + ragged-last-tile path (block_batch=8 -> 3 tiles over 20 rows).
    probs_multi = jax.block_until_ready(
        actor_forward_padded(x, dparams, block_batch=8))[:, :action_dim]
    assert jnp.allclose(probs_multi, probs, atol=1e-6)

    print("KERNEL_OK")
</pallas_src>

<mosaic_0001>
module attributes {stable_mosaic.version = 11 : i64} {
  func.func @_actor_kernel(%arg0: i32, %arg1: memref<24x5xf32, #tpu.memory_space<vmem>>, %arg2: memref<5x64xbf16, #tpu.memory_space<vmem>>, %arg3: memref<1x64xf32, #tpu.memory_space<vmem>>, %arg4: memref<64x64xbf16, #tpu.memory_space<vmem>>, %arg5: memref<1x64xf32, #tpu.memory_space<vmem>>, %arg6: memref<64x128xbf16, #tpu.memory_space<vmem>>, %arg7: memref<1x128xf32, #tpu.memory_space<vmem>>, %arg8: memref<24x128xf32, #tpu.memory_space<vmem>>) attributes {dimension_semantics = [#tpu.dimension_semantics<parallel>], iteration_bounds = array<i64: 1>, scalar_prefetch = 0 : i64, scratch_operands = 0 : i64, tpu.core_type = #tpu.core_type<tc>, window_params = [{transform_indices = @transform_0, window_bounds = array<i64: 24, 5>}, {pipeline_mode = #tpu.pipeline_mode<synchronous>, transform_indices = @transform_1, window_bounds = array<i64: 5, 64>}, {pipeline_mode = #tpu.pipeline_mode<synchronous>, transform_indices = @transform_2, window_bounds = array<i64: 1, 64>}, {pipeline_mode = #tpu.pipeline_mode<synchronous>, transform_indices = @transform_3, window_bounds = array<i64: 64, 64>}, {pipeline_mode = #tpu.pipeline_mode<synchronous>, transform_indices = @transform_4, window_bounds = array<i64: 1, 64>}, {pipeline_mode = #tpu.pipeline_mode<synchronous>, transform_indices = @transform_5, window_bounds = array<i64: 64, 128>}, {pipeline_mode = #tpu.pipeline_mode<synchronous>, transform_indices = @transform_6, window_bounds = array<i64: 1, 128>}, {transform_indices = @transform_7, window_bounds = array<i64: 24, 128>}]} {
    %c0 = arith.constant 0 : index
    %c0_0 = arith.constant 0 : index
    %0 = vector.load %arg1[%c0, %c0_0] : memref<24x5xf32, #tpu.memory_space<vmem>>, vector<24x5xf32>
    %1 = arith.truncf %0 : vector<24x5xf32> to vector<24x5xbf16>
    %c0_1 = arith.constant 0 : index
    %c0_2 = arith.constant 0 : index
    %2 = vector.load %arg2[%c0_1, %c0_2] : memref<5x64xbf16, #tpu.memory_space<vmem>>, vector<5x64xbf16>
    %cst = arith.constant dense<0.000000e+00> : vector<24x64xf32>
    %3 = tpu.matmul %1, %2, %cst {dimension_numbers = #tpu.dot_dimension_numbers<[1], [0], [0], [1], [0, 0, 1, 1], [], []>} : vector<24x5xbf16>, vector<5x64xbf16>, vector<24x64xf32> -> vector<24x64xf32>
    %c0_3 = arith.constant 0 : index
    %c0_4 = arith.constant 0 : index
    %4 = vector.load %arg3[%c0_3, %c0_4] : memref<1x64xf32, #tpu.memory_space<vmem>>, vector<1x64xf32>
    %5 = vector.broadcast %4 : vector<1x64xf32> to vector<24x64xf32>
    %6 = arith.addf %3, %5 : vector<24x64xf32>
    %cst_5 = arith.constant 0.000000e+00 : f32
    %7 = vector.broadcast %cst_5 : f32 to vector<24x64xf32>
    %8 = arith.maximumf %6, %7 : vector<24x64xf32>
    %9 = arith.truncf %8 : vector<24x64xf32> to vector<24x64xbf16>
    %c0_6 = arith.constant 0 : index
    %c0_7 = arith.constant 0 : index
    %10 = vector.load %arg4[%c0_6, %c0_7] : memref<64x64xbf16, #tpu.memory_space<vmem>>, vector<64x64xbf16>
    %cst_8 = arith.constant dense<0.000000e+00> : vector<24x64xf32>
    %11 = tpu.matmul %9, %10, %cst_8 {dimension_numbers = #tpu.dot_dimension_numbers<[1], [0], [0], [1], [0, 0, 1, 1], [], []>} : vector<24x64xbf16>, vector<64x64xbf16>, vector<24x64xf32> -> vector<24x64xf32>
    %c0_9 = arith.constant 0 : index
    %c0_10 = arith.constant 0 : index
    %12 = vector.load %arg5[%c0_9, %c0_10] : memref<1x64xf32, #tpu.memory_space<vmem>>, vector<1x64xf32>
    %13 = vector.broadcast %12 : vector<1x64xf32> to vector<24x64xf32>
    %14 = arith.addf %11, %13 : vector<24x64xf32>
    %cst_11 = arith.constant 0.000000e+00 : f32
    %15 = vector.broadcast %cst_11 : f32 to vector<24x64xf32>
    %16 = arith.maximumf %14, %15 : vector<24x64xf32>
    %17 = arith.truncf %16 : vector<24x64xf32> to vector<24x64xbf16>
    %c0_12 = arith.constant 0 : index
    %c0_13 = arith.constant 0 : index
    %18 = vector.load %arg6[%c0_12, %c0_13] : memref<64x128xbf16, #tpu.memory_space<vmem>>, vector<64x128xbf16>
    %cst_14 = arith.constant dense<0.000000e+00> : vector<24x128xf32>
    %19 = tpu.matmul %17, %18, %cst_14 {dimension_numbers = #tpu.dot_dimension_numbers<[1], [0], [0], [1], [0, 0, 1, 1], [], []>} : vector<24x64xbf16>, vector<64x128xbf16>, vector<24x128xf32> -> vector<24x128xf32>
    %c0_15 = arith.constant 0 : index
    %c0_16 = arith.constant 0 : index
    %20 = vector.load %arg7[%c0_15, %c0_16] : memref<1x128xf32, #tpu.memory_space<vmem>>, vector<1x128xf32>
    %21 = vector.broadcast %20 : vector<1x128xf32> to vector<24x128xf32>
    %22 = arith.addf %19, %21 : vector<24x128xf32>
    %cst_17 = arith.constant dense<0xFF800000> : vector<24xf32>
    %23 = vector.multi_reduction <maximumf>, %22, %cst_17 [1] : vector<24x128xf32> to vector<24xf32>
    %24 = vector.shape_cast %23 : vector<24xf32> to vector<24x1xf32>
    %25 = vector.broadcast %24 : vector<24x1xf32> to vector<24x128xf32>
    %26 = arith.subf %22, %25 : vector<24x128xf32>
    %27 = math.exp %26 : vector<24x128xf32>
    %cst_18 = arith.constant dense<0.000000e+00> : vector<24xf32>
    %28 = vector.multi_reduction <add>, %27, %cst_18 [1] : vector<24x128xf32> to vector<24xf32>
    %29 = vector.shape_cast %28 : vector<24xf32> to vector<24x1xf32>
    %30 = vector.broadcast %29 : vector<24x1xf32> to vector<24x128xf32>
    %31 = arith.divf %27, %30 : vector<24x128xf32>
    %c0_19 = arith.constant 0 : index
    %c0_20 = arith.constant 0 : index
    %32 = vector.load %arg8[%c0_19, %c0_20] : memref<24x128xf32, #tpu.memory_space<vmem>>, vector<24x128xf32>
    tpu.vector_store %arg8[%c0_19, %c0_20], %31 {strides = array<i32>} : memref<24x128xf32, #tpu.memory_space<vmem>>, vector<24x128xf32>,
    return
  }
  func.func @transform_0(%arg0: i32) -> (i32, i32) {
    %c0_i32 = arith.constant 0 : i32
    %c0_i32_0 = arith.constant 0 : i32
    return %arg0, %c0_i32 : i32, i32
  }
  func.func @transform_1(%arg0: i32) -> (i32, i32) {
    %c0_i32 = arith.constant 0 : i32
    %c0_i32_0 = arith.constant 0 : i32
    %c0_i32_1 = arith.constant 0 : i32
    return %c0_i32, %c0_i32_0 : i32, i32
  }
  func.func @transform_2(%arg0: i32) -> (i32, i32) {
    %c0_i32 = arith.constant 0 : i32
    %c0_i32_0 = arith.constant 0 : i32
    %c0_i32_1 = arith.constant 0 : i32
    return %c0_i32, %c0_i32_0 : i32, i32
  }
  func.func @transform_3(%arg0: i32) -> (i32, i32) {
    %c0_i32 = arith.constant 0 : i32
    %c0_i32_0 = arith.constant 0 : i32
    %c0_i32_1 = arith.constant 0 : i32
    return %c0_i32, %c0_i32_0 : i32, i32
  }
  func.func @transform_4(%arg0: i32) -> (i32, i32) {
    %c0_i32 = arith.constant 0 : i32
    %c0_i32_0 = arith.constant 0 : i32
    %c0_i32_1 = arith.constant 0 : i32
    return %c0_i32, %c0_i32_0 : i32, i32
  }
  func.func @transform_5(%arg0: i32) -> (i32, i32) {
    %c0_i32 = arith.constant 0 : i32
    %c0_i32_0 = arith.constant 0 : i32
    %c0_i32_1 = arith.constant 0 : i32
    return %c0_i32, %c0_i32_0 : i32, i32
  }
  func.func @transform_6(%arg0: i32) -> (i32, i32) {
    %c0_i32 = arith.constant 0 : i32
    %c0_i32_0 = arith.constant 0 : i32
    %c0_i32_1 = arith.constant 0 : i32
    return %c0_i32, %c0_i32_0 : i32, i32
  }
  func.func @transform_7(%arg0: i32) -> (i32, i32) {
    %c0_i32 = arith.constant 0 : i32
    %c0_i32_0 = arith.constant 0 : i32
    return %arg0, %c0_i32 : i32, i32
  }
}

</mosaic_0001>

<llo_original>
// kernel: actor_forward_padded.1
$region0: #{actor_forward_padded.1}
  #allocation0 [shape = 'u32[]', space=smem, size = 0x4, offset = 0x4, fixed_abs, tag = 'smem constant byte address 0x4 - core index']
  #allocation1 [shape = 'u32[144,128]{1,0:T(1,128)}', space=vmem, size = 0x12000, scoped, tag = 'internal scratch']
  %s0 = inlined_call_operand.vmem [shape: f32[20,5], index: 0, kind: input, shape index: {}]
  %s1 = inlined_call_operand.vmem [shape: bf16[5,64], index: 1, kind: input, shape index: {}]
  %s2 = inlined_call_operand.vmem [shape: f32[1,64], index: 2, kind: input, shape index: {}]
  %s3 = inlined_call_operand.vmem [shape: bf16[64,64], index: 3, kind: input, shape index: {}]
  %s4 = inlined_call_operand.vmem [shape: f32[1,64], index: 4, kind: input, shape index: {}]
  %s5 = inlined_call_operand.hbm [shape: bf16[64,128], index: 5, kind: input, shape index: {}]
  %s6 = inlined_call_operand.vmem [shape: f32[1,128], index: 6, kind: input, shape index: {}]
  %s7 = inlined_call_operand.hbm [shape: f32[20,128], index: 7, kind: output, shape index: {}]
  %s8 = sld [smem:[#allocation0]]
  $region42: #{actor_forward_padded.1} parent=0
    _
  %s10 = ssub.s32 1, %s8
  %s11 = scalar_select 0, %s10, %s8
  $region1: #{actor_forward_padded.1} parent=0
    #allocation2 [shape = 'u8[16384]{0}', space=vmem, size = 0x4000, scoped, tag = 'input window, operand 5, single buffered']
    #allocation3 [shape = 's32[1]{0}', space=sflag, size = 0x4, scoped, tag = 'scoped memory for actor_forward_padded.1']
    #allocation4 [shape = 's32[1]{0}', space=sflag, size = 0x4, scoped, tag = 'scoped memory for actor_forward_padded.1']
    #allocation5 [shape = 'u8[12288]{0}', space=vmem, size = 0x3000, scoped, tag = 'output window, operand 0, single buffered']
    %12 = vsyncpa [#allocation3], 0
    %13 = vsyncpa [#allocation4], 0
    // Predicated region
    $region2: #{actor_forward_padded.1} parent=1 // pred_check
      _
    $region3: #{actor_forward_padded.1} parent=1 // pred_check_branch
      %15 = sbr.rel (0) target = $region5
    $region4: #{actor_forward_padded.1} parent=1 // pred_region
      _
    $region5: #{actor_forward_padded.1} parent=1 // pred_fallthru
      _
    // Predicated region
    $region6: #{actor_forward_padded.1} parent=1 // pred_check
      _
    $region7: #{actor_forward_padded.1} parent=1 // pred_check_branch
      %17 = sbr.rel (0) target = $region9
    $region8: #{actor_forward_padded.1} parent=1 // pred_region
      _
    $region9: #{actor_forward_padded.1} parent=1 // pred_fallthru
      _
    // Predicated region
    $region10: #{actor_forward_padded.1} parent=1 // pred_check
      _
    $region11: #{actor_forward_padded.1} parent=1 // pred_check_branch
      %19 = sbr.rel (0) target = $region13
    $region12: #{actor_forward_padded.1} parent=1 // pred_region
      _
    $region13: #{actor_forward_padded.1} parent=1 // pred_fallthru
      _
    // Predicated region
    $region14: #{actor_forward_padded.1} parent=1 // pred_check
      _
    $region15: #{actor_forward_padded.1} parent=1 // pred_check_branch
      %21 = sbr.rel (0) target = $region17
    $region16: #{actor_forward_padded.1} parent=1 // pred_region
      _
    $region17: #{actor_forward_padded.1} parent=1 // pred_fallthru
      _
    // Predicated region
    $region18: #{actor_forward_padded.1} parent=1 // pred_check
      _
    $region19: #{actor_forward_padded.1} parent=1 // pred_check_branch
      %23 = sbr.rel (0) target = $region21
    $region20: #{actor_forward_padded.1} parent=1 // pred_region
      _
    $region21: #{actor_forward_padded.1} parent=1 // pred_fallthru
      _
    // Predicated region
    $region22: #{actor_forward_padded.1} parent=1 // pred_check
      _
    $region23: #{actor_forward_padded.1} parent=1 // pred_check_branch
      %25 = sbr.rel (0) target = $region25
    $region24: #{actor_forward_padded.1} parent=1 // pred_region
      %s27 = ssub.s32 512, 512
      %28 = vsyncadd [#allocation3], %s27
      %s29 = sshll.u32 [#allocation2], 4
      %s30 = int_to_ptr.vmem [resolvable:$true] %s29
      %35 = dma.hbm_to_vmem [thread:$0]  %s5, 512, %s30, [#allocation3], 64, 64, 4
    $region25: #{actor_forward_padded.1} parent=1 // pred_fallthru
      _
    // Predicated region
    $region26: #{actor_forward_padded.1} parent=1 // pred_check
      _
    $region27: #{actor_forward_padded.1} parent=1 // pred_check_branch
      %37 = sbr.rel (0) target = $region29
    $region28: #{actor_forward_padded.1} parent=1 // pred_region
      _
    $region29: #{actor_forward_padded.1} parent=1 // pred_fallthru
      _
    // Predicated region
    $region30: #{actor_forward_padded.1} parent=1 // pred_check
      _
    $region31: #{actor_forward_padded.1} parent=1 // pred_check_branch
      %39 = sbr.rel (0) target = $region33
    $region32: #{actor_forward_padded.1} parent=1 // pred_region
      %40 = dma.done [#allocation3], 512
    $region33: #{actor_forward_padded.1} parent=1 // pred_fallthru
      _
    %v42 = vld [vmem:[%s0] sm:$0xff]
    %v43 = vld [vmem:[%s0 + $0x8] sm:$0xff]
    %v44 = vld [vmem:[%s0 + $0x10] sm:$0xff]
    %v45 = vpack.c.bf16 %v43, %v42
    %v46 = vpack.c.bf16 %v44, %v44
    %v47 = vld [vmem:[%s1] sm:$0x7]
    %v48 = vld [vmem:[%s2] sm:$0x1]
    %v50 = vlaneseq
    %v51 = vshrl.u32 %v50, 7
    %v52 = vsub.s32 0, %v51
    %v53 = vrot.slane %v48, %v52
    %vm55 = vcmask 39936
    %v57 = vsel %vm55, %v45, 0
    %v60 = vsel %vm55, %v46, 0
    %vm62 = vcmask 1041408
    %vm63 = vcmask 1042432
    %v64 = vsel %vm62, 4294967295, 65535
    %v65 = vsel %vm63, %v64, 0
    %v67 = vand.u32 %v47, %v65
    %69 = vmatprep.subr.bf16.mxu0 0
    %70 = vmatpush1.bf16.msra.mxu0 %v67
    %71 = vmatprep.subr.bf16.mxu0 0
    %72 = vmatpush1.bf16.msra.mxu0 0
    %73 = vmatprep.subr.bf16.mxu0 0
    %74 = vmatpush1.bf16.msra.mxu0 0
    %75 = vmatprep.subr.bf16.mxu0 0
    %76 = vmatpush1.bf16.msra.mxu0 0
    %77 = vmatprep.subr.bf16.mxu0 0
    %78 = vmatpush1.bf16.msra.mxu0 0
    %79 = vmatprep.subr.bf16.mxu0 0
    %80 = vmatpush1.bf16.msra.mxu0 0
    %81 = vmatprep.subr.bf16.mxu0 0
    %82 = vmatpush1.bf16.msra.mxu0 0
    %83 = vmatprep.subr.bf16.mxu0 0
    %84 = vmatpush1.bf16.msra.mxu0 0
    %85 = vmatprep.subr.bf16.mxu0 0
    %86 = vmatpush1.bf16.msra.mxu0 0
    %87 = vmatprep.subr.bf16.mxu0 0
    %88 = vmatpush1.bf16.msra.mxu0 0
    %89 = vmatprep.subr.bf16.mxu0 0
    %90 = vmatpush1.bf16.msra.mxu0 0
    %91 = vmatprep.subr.bf16.mxu0 0
    %92 = vmatpush1.bf16.msra.mxu0 0
    %93 = vmatprep.subr.bf16.mxu0 0
    %94 = vmatpush1.bf16.msra.mxu0 0
    %95 = vmatprep.subr.bf16.mxu0 0
    %96 = vmatpush1.bf16.msra.mxu0 0
    %97 = vmatprep.subr.bf16.mxu0 0
    %98 = vmatpush1.bf16.msra.mxu0 0
    %99 = vmatprep.subr.bf16.mxu0 0
    %100 = vmatpush1.bf16.msra.mxu0 0
    %101 = vmatprep.mubr.bf16.mxu0 0
    %102 = vmatmul.mubr.bf16.gmra.mrb[0].mxu0 %v57
    %v103 = vpop.f32.mrb[0].mxu0
    %v104 = vadd.f32 %v53, %v103
    %v105 = vpop.f32.mrb[0].mxu0
    %v106 = vpop.f32.mrb[0].mxu0
    %v107 = vadd.f32 %v53, %v106
    %v108 = vpop.f32.mrb[0].mxu0
    %109 = vmatprep.mubr.bf16.mxu0 0
    %110 = vmatmul.mubr.bf16.gmra.mrb[0].mxu0 %v60
    %v111 = vpop.f32.mrb[0].mxu0
    %v112 = vadd.f32 %v53, %v111
    %v113 = vpop.f32.mrb[0].mxu0
    %v114 = vpop.f32.mrb[0].mxu0
    %v115 = vpop.f32.mrb[0].mxu0
    %116 = vdwg.mxu0
    %v117 = vmax.f32 %v104, 0.0
    %v118 = vmax.f32 %v107, 0.0
    %v119 = vmax.f32 %v112, 0.0
    %v120 = vpack.c.bf16 %v118, %v117
    %v121 = vpack.c.bf16 %v119, %v119
    %v122 = vld [vmem:[%s3] sm:$0xf]
    %v123 = vld [vmem:[%s3 + $0x4] sm:$0xf]
    %v124 = vld [vmem:[%s3 + $0x8] sm:$0xf]
    %v125 = vld [vmem:[%s3 + $0xc] sm:$0xf]
    %v126 = vld [vmem:[%s3 + $0x10] sm:$0xf]
    %v127 = vld [vmem:[%s3 + $0x14] sm:$0xf]
    %v128 = vld [vmem:[%s3 + $0x18] sm:$0xf]
    %v129 = vld [vmem:[%s3 + $0x1c] sm:$0xf]
    %v130 = vld [vmem:[%s4] sm:$0x1]
    %v132 = vlaneseq
    %v133 = vshrl.u32 %v132, 7
    %v134 = vsub.s32 0, %v133
    %v135 = vrot.slane %v130, %v134
    %v145 = vunpack.c.l.b16 %v122
    %v146 = vunpack.c.l.b16 %v123
    %v147 = vunpack.c.l.b16 %v124
    %v148 = vunpack.c.l.b16 %v125
    %v149 = vunpack.c.l.b16 %v126
    %v150 = vunpack.c.l.b16 %v127
    %v151 = vunpack.c.l.b16 %v128
    %v152 = vunpack.c.l.b16 %v129
    %v153 = vpack.c.b16 %v146, %v145
    %v154 = vpack.c.b16 %v148, %v147
    %v155 = vpack.c.b16 %v150, %v149
    %v156 = vpack.c.b16 %v152, %v151
    %vm161 = vcmask 523264
    %v163 = vsel %vm161, %v120, 0
    %v166 = vsel %vm161, %v121, 0
    %168 = vmatprep.subr.bf16.mxu0 0
    %169 = vmatpush1.bf16.msra.mxu0 %v153
    %170 = vmatprep.subr.bf16.mxu0 0
    %171 = vmatpush1.bf16.msra.mxu0 %v154
    %172 = vmatprep.subr.bf16.mxu0 0
    %173 = vmatpush1.bf16.msra.mxu0 %v155
    %174 = vmatprep.subr.bf16.mxu0 0
    %175 = vmatpush1.bf16.msra.mxu0 %v156
    %176 = vmatprep.subr.bf16.mxu0 0
    %177 = vmatpush1.bf16.msra.mxu0 0
    %178 = vmatprep.subr.bf16.mxu0 0
    %179 = vmatpush1.bf16.msra.mxu0 0
    %180 = vmatprep.subr.bf16.mxu0 0
    %181 = vmatpush1.bf16.msra.mxu0 0
    %182 = vmatprep.subr.bf16.mxu0 0
    %183 = vmatpush1.bf16.msra.mxu0 0
    %184 = vmatprep.subr.bf16.mxu0 0
    %185 = vmatpush1.bf16.msra.mxu0 0
    %186 = vmatprep.subr.bf16.mxu0 0
    %187 = vmatpush1.bf16.msra.mxu0 0
    %188 = vmatprep.subr.bf16.mxu0 0
    %189 = vmatpush1.bf16.msra.mxu0 0
    %190 = vmatprep.subr.bf16.mxu0 0
    %191 = vmatpush1.bf16.msra.mxu0 0
    %192 = vmatprep.subr.bf16.mxu0 0
    %193 = vmatpush1.bf16.msra.mxu0 0
    %194 = vmatprep.subr.bf16.mxu0 0
    %195 = vmatpush1.bf16.msra.mxu0 0
    %196 = vmatprep.subr.bf16.mxu0 0
    %197 = vmatpush1.bf16.msra.mxu0 0
    %198 = vmatprep.subr.bf16.mxu0 0
    %199 = vmatpush1.bf16.msra.mxu0 0
    %200 = vmatprep.mubr.bf16.mxu0 0
    %201 = vmatmul.mubr.bf16.gmra.mrb[0].mxu0 %v163
    %v202 = vpop.f32.mrb[0].mxu0
    %v203 = vadd.f32 %v135, %v202
    %v204 = vpop.f32.mrb[0].mxu0
    %v205 = vpop.f32.mrb[0].mxu0
    %v206 = vadd.f32 %v135, %v205
    %v207 = vpop.f32.mrb[0].mxu0
    %208 = vmatprep.mubr.bf16.mxu0 0
    %209 = vmatmul.mubr.bf16.gmra.mrb[0].mxu0 %v166
    %v210 = vpop.f32.mrb[0].mxu0
    %v211 = vadd.f32 %v135, %v210
    %v212 = vpop.f32.mrb[0].mxu0
    %v213 = vpop.f32.mrb[0].mxu0
    %v214 = vpop.f32.mrb[0].mxu0
    %215 = vdwg.mxu0
    %v216 = vmax.f32 %v203, 0.0
    %v217 = vmax.f32 %v206, 0.0
    %v218 = vmax.f32 %v211, 0.0
    %v219 = vpack.c.bf16 %v217, %v216
    %v220 = vpack.c.bf16 %v218, %v218
    %v221 = vld [vmem:[#allocation2] sm:$0xf]
    %v222 = vld [vmem:[#allocation2 + $0x4] sm:$0xf]
    %v223 = vld [vmem:[#allocation2 + $0x8] sm:$0xf]
    %v224 = vld [vmem:[#allocation2 + $0xc] sm:$0xf]
    %v225 = vld [vmem:[#allocation2 + $0x10] sm:$0xf]
    %v226 = vld [vmem:[#allocation2 + $0x14] sm:$0xf]
    %v227 = vld [vmem:[#allocation2 + $0x18] sm:$0xf]
    %v228 = vld [vmem:[#allocation2 + $0x1c] sm:$0xf]
    %v229 = vld [vmem:[%s6] sm:$0x1]
    %v231 = vlaneseq
    %v232 = vshrl.u32 %v231, 7
    %v233 = vsub.s32 0, %v232
    %v234 = vrot.slane %v229, %v233
    %v244 = vunpack.c.l.b16 %v221
    %v245 = vunpack.c.l.b16 %v222
    %v246 = vunpack.c.l.b16 %v223
    %v247 = vunpack.c.l.b16 %v224
    %v248 = vunpack.c.l.b16 %v225
    %v249 = vunpack.c.l.b16 %v226
    %v250 = vunpack.c.l.b16 %v227
    %v251 = vunpack.c.l.b16 %v228
    %v252 = vpack.c.b16 %v245, %v244
    %v253 = vpack.c.b16 %v247, %v246
    %v254 = vpack.c.b16 %v249, %v248
    %v255 = vpack.c.b16 %v251, %v250
    %v261 = vsel %vm161, %v219, 0
    %v264 = vsel %vm161, %v220, 0
    %266 = vmatprep.subr.bf16.mxu0 0
    %267 = vmatpush1.bf16.msra.mxu0 %v252
    %268 = vmatprep.subr.bf16.mxu0 0
    %269 = vmatpush1.bf16.msra.mxu0 %v253
    %270 = vmatprep.subr.bf16.mxu0 0
    %271 = vmatpush1.bf16.msra.mxu0 %v254
    %272 = vmatprep.subr.bf16.mxu0 0
    %273 = vmatpush1.bf16.msra.mxu0 %v255
    %274 = vmatprep.subr.bf16.mxu0 0
    %275 = vmatpush1.bf16.msra.mxu0 0
    %276 = vmatprep.subr.bf16.mxu0 0
    %277 = vmatpush1.bf16.msra.mxu0 0
    %278 = vmatprep.subr.bf16.mxu0 0
    %279 = vmatpush1.bf16.msra.mxu0 0
    %280 = vmatprep.subr.bf16.mxu0 0
    %281 = vmatpush1.bf16.msra.mxu0 0
    %282 = vmatprep.subr.bf16.mxu0 0
    %283 = vmatpush1.bf16.msra.mxu0 0
    %284 = vmatprep.subr.bf16.mxu0 0
    %285 = vmatpush1.bf16.msra.mxu0 0
    %286 = vmatprep.subr.bf16.mxu0 0
    %287 = vmatpush1.bf16.msra.mxu0 0
    %288 = vmatprep.subr.bf16.mxu0 0
    %289 = vmatpush1.bf16.msra.mxu0 0
    %290 = vmatprep.subr.bf16.mxu0 0
    %291 = vmatpush1.bf16.msra.mxu0 0
    %292 = vmatprep.subr.bf16.mxu0 0
    %293 = vmatpush1.bf16.msra.mxu0 0
    %294 = vmatprep.subr.bf16.mxu0 0
    %295 = vmatpush1.bf16.msra.mxu0 0
    %296 = vmatprep.subr.bf16.mxu0 0
    %297 = vmatpush1.bf16.msra.mxu0 0
    %298 = vmatprep.mubr.bf16.mxu0 0
    %299 = vmatmul.mubr.bf16.gmra.mrb[0].mxu0 %v261
    %v300 = vpop.f32.mrb[0].mxu0
    %v301 = vadd.f32 %v234, %v300
    %v302 = vpop.f32.mrb[0].mxu0
    %v303 = vpop.f32.mrb[0].mxu0
    %v304 = vadd.f32 %v234, %v303
    %v305 = vpop.f32.mrb[0].mxu0
    %306 = vmatprep.mubr.bf16.mxu0 0
    %307 = vmatmul.mubr.bf16.gmra.mrb[0].mxu0 %v264
    %v308 = vpop.f32.mrb[0].mxu0
    %v309 = vadd.f32 %v234, %v308
    %v310 = vpop.f32.mrb[0].mxu0
    %v311 = vpop.f32.mrb[0].mxu0
    %v312 = vpop.f32.mrb[0].mxu0
    %313 = vdwg.mxu0
    %314 = vmax.xlane.f32.xlu0 %v301
    %v315 = vpop.xlane.xlu0 %314
    %316 = vmax.xlane.f32.xlu0 %v304
    %v317 = vpop.xlane.xlu0 %316
    %318 = vmax.xlane.f32.xlu0 %v309
    %v319 = vpop.xlane.xlu0 %318
    %v320 = vsub.f32 %v301, %v315
    %v321 = vsub.f32 %v304, %v317
    %v322 = vsub.f32 %v309, %v319
    %v323 = vmul.f32 %v320, 1.442695
    %v324 = vpow.pop %v323
    %v325 = vmul.f32 %v321, 1.442695
    %v326 = vpow.pop %v325
    %v327 = vmul.f32 %v322, 1.442695
    %v328 = vpow.pop %v327
    %329 = vadd.xlane.f32.xlu0 %v324
    %v330 = vpop.xlane.xlu0 %329
    %331 = vadd.xlane.f32.xlu0 %v326
    %v332 = vpop.xlane.xlu0 %331
    %333 = vadd.xlane.f32.xlu0 %v328
    %v334 = vpop.xlane.xlu0 %333
    %v335 = vrcp.pop %v330
    %v336 = vmul.f32 %v324, %v335
    %v337 = vrcp.pop %v332
    %v338 = vmul.f32 %v326, %v337
    %v339 = vrcp.pop %v334
    %v340 = vmul.f32 %v328, %v339
    %341 = vst [vmem:[#allocation5] sm:$0xff] %v336
    %342 = vst [vmem:[#allocation5 + $0x8] sm:$0xff] %v338
    %343 = vst [vmem:[#allocation5 + $0x10] sm:$0xff] %v340
    // Predicated region
    $region34: #{actor_forward_padded.1} parent=1 // pred_check
      _
    $region35: #{actor_forward_padded.1} parent=1 // pred_check_branch
      %345 = sbr.rel (0) target = $region37
    $region36: #{actor_forward_padded.1} parent=1 // pred_region
      %s347 = ssub.s32 384, 384
      %348 = vsyncadd [#allocation4], %s347
      %s349 = sshll.u32 [#allocation5], 4
      %s350 = int_to_ptr.vmem [resolvable:$true] %s349
      %355 = dma.vmem_to_hbm [thread:$0]  %s350, 384, %s7, [#allocation4], 128, 128, 8
    $region37: #{actor_forward_padded.1} parent=1 // pred_fallthru
      _
    // Predicated region
    $region38: #{actor_forward_padded.1} parent=1 // pred_check
      _
    $region39: #{actor_forward_padded.1} parent=1 // pred_check_branch
      %357 = sbr.rel (0) target = $region41
    $region40: #{actor_forward_padded.1} parent=1 // pred_region
      %358 = dma.done [#allocation4], 384
    $region41: #{actor_forward_padded.1} parent=1 // pred_fallthru
      _
    %359 = vsyncpa [#allocation3], 1
    %360 = vsyncpa [#allocation4], 1

</llo_original>
